<compile_context>
chip_gen: v5e
topology: v5e:2x2
jax: 0.10.0
libtpu: 0.0.40
codegen_flags: <defaults>
</compile_context>

<pallas_src>
import functools

import jax
import jax.numpy as jnp
from jax.experimental import pallas as pl
from jax.experimental.pallas import tpu as pltpu


# --------------------------------------------------------------------------- #
# Kernel 1: CPW node update   H1 = relu(A @ HW + bn1),  HW = H @ Wn1
#           gridded over node-row tiles (megacore "parallel").
# --------------------------------------------------------------------------- #
def _node_update_kernel(a_ref, hw_ref, bn1_ref, h1_ref):
    f32 = jnp.float32
    h1 = jnp.dot(a_ref[...], hw_ref[...], preferred_element_type=f32)    # [tm, hidden]
    h1 = h1 + bn1_ref[...].astype(f32)
    h1_ref[...] = jnp.maximum(h1, 0.0).astype(h1_ref.dtype)


# --------------------------------------------------------------------------- #
# Kernel 2: CPW edge update + IPW aggregation + classifier head + log_softmax,
#           gridded over node-row tiles (streams the O(N^2) edge tensor).
# --------------------------------------------------------------------------- #
def _ipw_kernel(a_ref, e_ref, h1_ref, wn2_ref, we2_ref, bn2_ref,
                we1_ref, be1_ref, out_ref, *, n_classes):
    f32 = jnp.float32
    tn, n_nodes = a_ref.shape
    d_edge, hidden = we1_ref.shape

    a_cdt = a_ref[...]                         # [tn, N] compute dtype (feeds the MXU)
    a_f32 = a_cdt.astype(f32)                  # [tn, N] f32 for the VPU weighting

    # Lane-dense per-channel edge slabs: eks[k][i, j] = E[i, j, k]  (N on lanes).
    eks = [e_ref[:, k * n_nodes:(k + 1) * n_nodes].astype(f32) for k in range(d_edge)]

    # CPW edge update + IPW aggregation, one hidden channel at a time (K=d_edge
    # is tiny, so the contraction lives on the VPU; We1/be1 scalars from SMEM):
    #   e1_h        = relu(sum_k e_k * We1[k, h] + be1[h])     [tn, N]
    #   E_agg[:, h] = sum_j A * e1_h                           [tn, 1]
    cols = []
    for h in range(hidden):
        pre = eks[0] * we1_ref[0, h]
        for k in range(1, d_edge):
            pre = pre + eks[k] * we1_ref[k, h]
        e1_h = jnp.maximum(pre + be1_ref[0, h], 0.0)
        cols.append(jnp.sum(a_f32 * e1_h, axis=1, keepdims=True))
    e_agg = jnp.concatenate(cols, axis=1)                                # [tn, hidden] f32

    # IPW node path reassociated to (A @ H1) @ Wn2; head = two accumulating
    # f32 dots (no VMEM scratch concat).
    ah1 = jnp.dot(a_cdt, h1_ref[...], preferred_element_type=f32)        # [tn, hidden]
    logits = (jnp.dot(ah1, wn2_ref[...], preferred_element_type=f32)
              + jnp.dot(e_agg, we2_ref[...], preferred_element_type=f32)
              + bn2_ref[...].astype(f32))                                # [tn, c_pad]

    # Masked log_softmax over the real class lanes (output is lane-padded).
    col = jax.lax.broadcasted_iota(jnp.int32, logits.shape, 1)
    valid = col < n_classes
    z = jnp.where(valid, logits, jnp.finfo(f32).min)
    m = jnp.max(z, axis=1, keepdims=True)
    zm = z - m
    lse = jnp.log(jnp.sum(jnp.exp(zm), axis=1, keepdims=True))   # pad lanes underflow to 0
    out_ref[...] = jnp.where(valid, zm - lse, 0.0).astype(out_ref.dtype)


# --------------------------------------------------------------------------- #
# Helpers
# --------------------------------------------------------------------------- #
def _vmem_limit_bytes():
    # 48 MiB is safe on every generation (v7x has 64 MiB total); v5e/v6e (128
    # MiB) get a larger limit when the capacity is queryable.
    limit = 48 * 1024 * 1024
    try:
        cap = getattr(pltpu.get_tpu_info(), "vmem_capacity_bytes", None)
        if cap:
            limit = int(min(100 * 1024 * 1024, max(32 * 1024 * 1024, (cap * 3) // 4)))
    except Exception:
        pass
    return limit


def _resident_spec(block_shape, index_map):
    # Constant-index residents: single-buffered if the API supports it
    # (halves their VMEM footprint); otherwise default double buffering.
    buffered = getattr(pl, "Buffered", None)
    if buffered is not None:
        try:
            return pl.BlockSpec(block_shape, index_map, pipeline_mode=buffered(1))
        except TypeError:
            pass
    return pl.BlockSpec(block_shape, index_map)


def _pick_node_tile(n_nodes, d_edge, c_pad, itemsize, budget_bytes):
    """Largest node-row tile whose streaming footprint fits `budget_bytes`.

    Budgets the double-buffered E and A tiles, the f32 channel slabs the kernel
    keeps live, and the double-buffered output tile (small residents such as H1
    and the head weights are covered by the caller's vmem_limit headroom).
    """
    per_row = n_nodes * (2 * d_edge * itemsize      # E tile (double buffered)
                         + 2 * itemsize             # A tile (double buffered)
                         + (d_edge + 3) * 4)        # in-kernel f32 slabs / temps
    per_row += 2 * c_pad * 4                        # output tile (double buffered)
    cap = max(8, budget_bytes // max(per_row, 1))
    for t in (512, 256, 128, 64, 32, 16, 8):
        # Prefer >= 2 tiles so both v7x TensorCores get balanced work.
        if n_nodes % t == 0 and n_nodes // t >= 2 and (t <= cap or t == 8):
            return t
    return n_nodes


def init_params(key, d_node, d_edge, n_classes, hidden):
    ks = jax.random.split(key, 4)

    def glorot(k, shape):
        fan_in, fan_out = shape
        lim = (6.0 / (fan_in + fan_out)) ** 0.5
        return jax.random.uniform(k, shape, jnp.float32, -lim, lim)

    return {
        "Wn1": glorot(ks[0], (d_node, hidden)),
        "bn1": jnp.zeros((1, hidden), jnp.float32),
        "We1": glorot(ks[1], (d_edge, hidden)),
        "be1": jnp.zeros((1, hidden), jnp.float32),
        "Wn2": glorot(ks[2], (hidden, n_classes)),
        "bn2": jnp.zeros((1, n_classes), jnp.float32),
        "We2": glorot(ks[3], (hidden, n_classes)),
    }


# --------------------------------------------------------------------------- #
# Forward pass
# --------------------------------------------------------------------------- #
def cpw_net_forward(H, A, E, params, *, compute_dtype=jnp.bfloat16, tile_nodes=None):
    f32 = jnp.float32
    cdt = compute_dtype
    N = H.shape[0]
    d_edge = E.shape[-1]
    hidden = params["Wn1"].shape[1]
    n_classes = params["Wn2"].shape[1]
    c_pad = max(128, ((n_classes + 127) // 128) * 128)

    vmem_limit = _vmem_limit_bytes()
    itemsize = jnp.dtype(cdt).itemsize
    if tile_nodes is None:
        budget = min(40 * 1024 * 1024, (vmem_limit * 5) // 8)
        tn = _pick_node_tile(N, d_edge, c_pad, itemsize, budget)
    else:
        tn = tile_nodes
    assert N % tn == 0, "node tile must divide N"
    assert tn % 8 == 0 or tn == N, "node tile must be a multiple of 8 (sublane tiling)"

    # Streamed / resident operands.
    A_c = A.astype(cdt)                                                   # [N, N]
    # HW = H @ Wn1 is a tiny [N, d_node] @ [d_node, hidden] matmul, precomputed
    # once so kernel 1 only needs the streamed A tile + the resident HW.
    HW = jnp.dot(H.astype(f32), params["Wn1"]).astype(cdt)               # [N, hidden]
    bn1 = params["bn1"].astype(f32)

    # Lane-dense edge stream: [N, N, d_edge] -> [N, d_edge, N] -> [N, d_edge*N].
    # TODO(synk): the one-off XLA transpose costs an extra pass over E; an
    # in-kernel strided-lane deinterleave (pl.ds(k, N, stride=d_edge)) would
    # avoid it but depends on lane-strided load lowering, so it is not used.
    E_t = jnp.transpose(E.astype(cdt), (0, 2, 1)).reshape(N, d_edge * N)

    Wn2p = jnp.pad(params["Wn2"], ((0, 0), (0, c_pad - n_classes))).astype(f32)
    We2p = jnp.pad(params["We2"], ((0, 0), (0, c_pad - n_classes))).astype(f32)
    bn2p = jnp.pad(params["bn2"], ((0, 0), (0, c_pad - n_classes))).astype(f32)
    We1 = params["We1"].astype(f32)     # SMEM scalars
    be1 = params["be1"].astype(f32)     # SMEM scalars

    smem_spec = pl.BlockSpec(memory_space=pltpu.MemorySpace.SMEM)

    # ------------------ Kernel 1: node update (gridded over node tiles) -----------------
    H1 = pl.pallas_call(
        _node_update_kernel,
        out_shape=jax.ShapeDtypeStruct((N, hidden), cdt),
        grid=(N // tn,),
        in_specs=[
            pl.BlockSpec((tn, N), lambda i: (i, 0)),                 # A rows (streamed)
            _resident_spec((N, hidden), lambda i: (0, 0)),           # HW (resident)
            _resident_spec((1, hidden), lambda i: (0, 0)),           # bn1
        ],
        out_specs=pl.BlockSpec((tn, hidden), lambda i: (i, 0)),
        compiler_params=pltpu.CompilerParams(
            dimension_semantics=("parallel",),
            vmem_limit_bytes=vmem_limit),
    )(A_c, HW, bn1)

    # ------------------ Kernel 2: edge path + IPW + head + log_softmax ------------------
    flops = int(2 * N * N * d_edge * hidden       # per-edge transform (VPU FMAs)
                + 2 * N * N * hidden              # adjacency weighting + reduce
                + 2 * N * N * hidden              # A @ H1 (MXU)
                + 2 * N * hidden * c_pad * 2)     # classifier head (two dots)
    bytes_accessed = int(E_t.size * E_t.dtype.itemsize
                         + A_c.size * A_c.dtype.itemsize
                         + H1.size * jnp.dtype(cdt).itemsize
                         + (Wn2p.size + We2p.size + bn2p.size + We1.size + be1.size) * 4
                         + N * c_pad * 4)
    cost = pl.CostEstimate(flops=flops, transcendentals=int(N * c_pad + N),
                           bytes_accessed=bytes_accessed)

    kernel = functools.partial(_ipw_kernel, n_classes=n_classes)
    out_padded = pl.pallas_call(
        kernel,
        out_shape=jax.ShapeDtypeStruct((N, c_pad), f32),
        grid=(N // tn,),
        in_specs=[
            pl.BlockSpec((tn, N), lambda i: (i, 0)),                 # A rows (node + edge paths)
            pl.BlockSpec((tn, d_edge * N), lambda i: (i, 0)),        # lane-dense edge stream
            _resident_spec((N, hidden), lambda i: (0, 0)),           # H1 (resident)
            _resident_spec((hidden, c_pad), lambda i: (0, 0)),       # Wn2 (padded, f32)
            _resident_spec((hidden, c_pad), lambda i: (0, 0)),       # We2 (padded, f32)
            _resident_spec((1, c_pad), lambda i: (0, 0)),            # bn2 (padded, f32)
            smem_spec,                                               # We1 scalars (SMEM)
            smem_spec,                                               # be1 scalars (SMEM)
        ],
        out_specs=pl.BlockSpec((tn, c_pad), lambda i: (i, 0)),
        compiler_params=pltpu.CompilerParams(
            dimension_semantics=("parallel",),
            vmem_limit_bytes=vmem_limit),
        cost_estimate=cost,
    )(A_c, E_t, H1, Wn2p, We2p, bn2p, We1, be1)

    return out_padded[:, :n_classes]


def cpw_net_reference(H, A, E, params):
    # Pure-JAX reference of the same semantics (sanity check).
    N = H.shape[0]
    H1 = jnp.maximum(A @ (H @ params["Wn1"]) + params["bn1"], 0.0)
    E1 = jnp.maximum(E.reshape(N * N, -1) @ params["We1"] + params["be1"], 0.0)
    E1 = E1.reshape(N, N, -1)
    E_agg = jnp.sum(A[:, :, None] * E1, axis=1)
    logits = A @ (H1 @ params["Wn2"]) + E_agg @ params["We2"] + params["bn2"]
    return jax.nn.log_softmax(logits, axis=1)


if __name__ == "__main__":
    # Small deterministic shapes: N nodes, node/edge feature dims, hidden, classes.
    N, d_node, d_edge, hidden, n_classes = 16, 4, 4, 32, 8

    key = jax.random.PRNGKey(0)
    k_h, k_a, k_e, k_p = jax.random.split(key, 4)

    H = jax.random.normal(k_h, (N, d_node), jnp.float32)
    A_raw = (jax.random.uniform(k_a, (N, N)) < 0.3).astype(jnp.float32)
    A = jnp.clip(A_raw + A_raw.T + jnp.eye(N, dtype=jnp.float32), 0.0, 1.0)
    A = A / jnp.sum(A, axis=1, keepdims=True)
    E = jax.random.normal(k_e, (N, N, d_edge), jnp.float32)

    params = init_params(k_p, d_node, d_edge, n_classes, hidden)
    ref = cpw_net_reference(H, A, E, params)

    # f32 path (tile=8 -> grid of 2 node tiles), tight check.
    out_f32 = jax.block_until_ready(
        cpw_net_forward(H, A, E, params, compute_dtype=jnp.float32, tile_nodes=8))
    assert out_f32.shape == (N, n_classes)
    assert jnp.allclose(out_f32, ref, atol=1e-3, rtol=1e-3)

    # bf16 streaming path (default; f32 accumulation / f32 epilogue), looser check.
    out_bf16 = jax.block_until_ready(
        cpw_net_forward(H, A, E, params, compute_dtype=jnp.bfloat16, tile_nodes=8))
    assert out_bf16.shape == (N, n_classes)
    assert jnp.allclose(out_bf16, ref, atol=1e-1, rtol=1e-1)

    # Auto tile-selection path (default bf16 stream).
    out_auto = jax.block_until_ready(cpw_net_forward(H, A, E, params))
    assert out_auto.shape == (N, n_classes)
    assert jnp.allclose(out_auto, ref, atol=1e-1, rtol=1e-1)

    print("KERNEL_OK")
</pallas_src>

<mosaic_0001>
module attributes {stable_mosaic.version = 11 : i64} {
  func.func @_node_update_kernel(%arg0: i32, %arg1: memref<8x16xf32, #tpu.memory_space<vmem>>, %arg2: memref<16x32xf32, #tpu.memory_space<vmem>>, %arg3: memref<1x32xf32, #tpu.memory_space<vmem>>, %arg4: memref<8x32xf32, #tpu.memory_space<vmem>>) attributes {dimension_semantics = [#tpu.dimension_semantics<parallel>], iteration_bounds = array<i64: 2>, scalar_prefetch = 0 : i64, scratch_operands = 0 : i64, tpu.core_type = #tpu.core_type<tc>, window_params = [{transform_indices = @transform_0, window_bounds = array<i64: 8, 16>}, {pipeline_mode = #tpu.pipeline_mode<synchronous>, transform_indices = @transform_1, window_bounds = array<i64: 16, 32>}, {pipeline_mode = #tpu.pipeline_mode<synchronous>, transform_indices = @transform_2, window_bounds = array<i64: 1, 32>}, {transform_indices = @transform_3, window_bounds = array<i64: 8, 32>}]} {
    %c0 = arith.constant 0 : index
    %c0_0 = arith.constant 0 : index
    %0 = vector.load %arg1[%c0, %c0_0] : memref<8x16xf32, #tpu.memory_space<vmem>>, vector<8x16xf32>
    %c0_1 = arith.constant 0 : index
    %c0_2 = arith.constant 0 : index
    %1 = vector.load %arg2[%c0_1, %c0_2] : memref<16x32xf32, #tpu.memory_space<vmem>>, vector<16x32xf32>
    %cst = arith.constant dense<0.000000e+00> : vector<8x32xf32>
    %2 = tpu.matmul %0, %1, %cst {dimension_numbers = #tpu.dot_dimension_numbers<[1], [0], [0], [1], [0, 0, 1, 1], [], []>} : vector<8x16xf32>, vector<16x32xf32>, vector<8x32xf32> -> vector<8x32xf32>
    %c0_3 = arith.constant 0 : index
    %c0_4 = arith.constant 0 : index
    %3 = vector.load %arg3[%c0_3, %c0_4] : memref<1x32xf32, #tpu.memory_space<vmem>>, vector<1x32xf32>
    %4 = vector.broadcast %3 : vector<1x32xf32> to vector<8x32xf32>
    %5 = arith.addf %2, %4 : vector<8x32xf32>
    %cst_5 = arith.constant 0.000000e+00 : f32
    %6 = vector.broadcast %cst_5 : f32 to vector<8x32xf32>
    %7 = arith.maximumf %5, %6 : vector<8x32xf32>
    %c0_6 = arith.constant 0 : index
    %c0_7 = arith.constant 0 : index
    %8 = vector.load %arg4[%c0_6, %c0_7] : memref<8x32xf32, #tpu.memory_space<vmem>>, vector<8x32xf32>
    tpu.vector_store %arg4[%c0_6, %c0_7], %7 {strides = array<i32>} : memref<8x32xf32, #tpu.memory_space<vmem>>, vector<8x32xf32>,
    return
  }
  func.func @transform_0(%arg0: i32) -> (i32, i32) {
    %c0_i32 = arith.constant 0 : i32
    %c0_i32_0 = arith.constant 0 : i32
    return %arg0, %c0_i32 : i32, i32
  }
  func.func @transform_1(%arg0: i32) -> (i32, i32) {
    %c0_i32 = arith.constant 0 : i32
    %c0_i32_0 = arith.constant 0 : i32
    %c0_i32_1 = arith.constant 0 : i32
    return %c0_i32, %c0_i32_0 : i32, i32
  }
  func.func @transform_2(%arg0: i32) -> (i32, i32) {
    %c0_i32 = arith.constant 0 : i32
    %c0_i32_0 = arith.constant 0 : i32
    %c0_i32_1 = arith.constant 0 : i32
    return %c0_i32, %c0_i32_0 : i32, i32
  }
  func.func @transform_3(%arg0: i32) -> (i32, i32) {
    %c0_i32 = arith.constant 0 : i32
    %c0_i32_0 = arith.constant 0 : i32
    return %arg0, %c0_i32 : i32, i32
  }
}

</mosaic_0001>

<llo_original>
// kernel: tpu_custom_call.1
$region0: #{tpu_custom_call.1}
  #allocation0 [shape = 'u32[]', space=smem, size = 0x4, offset = 0x4, fixed_abs, tag = 'smem constant byte address 0x4 - core index']
  #allocation1 [shape = 'u32[72,128]{1,0:T(1,128)}', space=vmem, size = 0x9000, scoped, tag = 'internal scratch']
  %s0 = inlined_call_operand.hbm [shape: f32[16,16], index: 0, kind: input, shape index: {}]
  %s1 = inlined_call_operand.hbm [shape: f32[16,32], index: 1, kind: input, shape index: {}]
  %s2 = inlined_call_operand.vmem [shape: f32[1,32], index: 2, kind: input, shape index: {}]
  %s3 = inlined_call_operand.hbm [shape: f32[16,32], index: 3, kind: output, shape index: {}]
  %s4 = sld [smem:[#allocation0]]
  $region53: #{tpu_custom_call.1} parent=0
    _
  %s6 = ssub.s32 1, %s4
  %s7 = scalar_select 0, %s6, %s4
  $region1: #{tpu_custom_call.1} parent=0
    #allocation2 [shape = 'u8[8192]{0}', space=vmem, size = 0x2000, scoped, tag = 'input window, operand 0']
    #allocation3 [shape = 's32[2]{0}', space=sflag, size = 0x8, scoped, tag = 'scoped memory for tpu_custom_call.1']
    #allocation4 [shape = 's32[2]{0}', space=sflag, size = 0x8, scoped, tag = 'scoped memory for tpu_custom_call.1']
    #allocation5 [shape = 'u8[8192]{0}', space=vmem, size = 0x2000, scoped, tag = 'input window, operand 1, single buffered']
    #allocation6 [shape = 's32[1]{0}', space=sflag, size = 0x4, scoped, tag = 'scoped memory for tpu_custom_call.1']
    #allocation7 [shape = 'u8[8192]{0}', space=vmem, size = 0x2000, scoped, tag = 'output window, operand 0']
    %8 = vsyncpa [#allocation3], 0
    %s9 = scalar_lea.sflag [#allocation3], 1
    %10 = vsyncpa %s9, 0
    %11 = vsyncpa [#allocation6], 0
    %12 = vsyncpa [#allocation4], 0
    %s13 = scalar_lea.sflag [#allocation4], 1
    %14 = vsyncpa %s13, 0
    loop: start=0, step=1, limit=4
    $region2: #{tpu_custom_call.1} parent=1 // loop_pre_header
      _
    $region3: #{tpu_custom_call.1} parent=1 // loop_header
      %s16 = sphi 0, %s20
      %p17 = scmp.ge.s32.totalorder %s16, 4
      %s26 = sphi 0, %s28
      %s29 = sphi 0, %s26
      %s30 = sphi 0, %s29
      %s46 = sphi 0, %s30
      %s50 = sphi 0, %s50
      %s52 = sphi 0, %s50
      %s53 = sphi 0, %s52
      %s67 = sphi 0, %s53
      %s71 = sphi 0, %s71
      %s73 = sphi 0, %s71
      %s74 = sphi 0, %s73
      %s88 = sphi 0, %s74
      %s94 = sphi 0, %s96
      %s97 = sphi 0, %s94
      %s98 = sphi 0, %s97
      %s114 = sphi 0, %s98
    $region4: #{tpu_custom_call.1} parent=1 // loop_header_branch
      %19 = sbr.rel (%p17) target = $region8
    $region5: #{tpu_custom_call.1} parent=1 // loop_body
      %s21 = ssub.s32 %s16, 1
      %s22 = ssub.s32 %s16, 2
      %s23 = sadd.s32 %s16, 1
      %s24 = ssub.s32 %s16, %s23
      %p25 = scmp.eq.s32.totalorder %s24, 0
      %s27 = sadd.s32 %s26, 1
      %s28 = scalar_select %p25, %s26, %s27
      %p31 = pneg %p25
      %p32 = scmp.eq.s32.totalorder %s16, 1
      %p33 = por %p31, %p32
      %p34 = scmp.ne.s32.totalorder %s26, %s29
      %p35 = scmp.eq.s32.totalorder %s16, 0
      %p36 = por %p34, %p35
      %p37 = scmp.ne.s32.totalorder %s26, %s29
      %p38 = scmp.eq.s32.totalorder %s21, 1
      %p39 = por %p37, %p38
      %p40 = scmp.ne.s32.totalorder %s29, %s30
      %p41 = scmp.eq.s32.totalorder %s21, 0
      %p42 = por %p40, %p41
      %p43 = scmp.ne.s32.totalorder %s29, %s30
      %p44 = scmp.eq.s32.totalorder %s22, 1
      %p45 = por %p43, %p44
      %p47 = scmp.ne.s32.totalorder %s30, %s46
      %p48 = scmp.eq.s32.totalorder %s22, 0
      %p49 = por %p47, %p48
      %s51 = sadd.s32 %s50, 1
      %p54 = scmp.eq.s32.totalorder %s16, 1
      %p55 = scmp.ne.s32.totalorder %s50, %s52
      %p56 = scmp.eq.s32.totalorder %s16, 0
      %p57 = por %p55, %p56
      %p58 = scmp.ne.s32.totalorder %s50, %s52
      %p59 = scmp.eq.s32.totalorder %s21, 1
      %p60 = por %p58, %p59
      %p61 = scmp.ne.s32.totalorder %s52, %s53
      %p62 = scmp.eq.s32.totalorder %s21, 0
      %p63 = por %p61, %p62
      %p64 = scmp.ne.s32.totalorder %s52, %s53
      %p65 = scmp.eq.s32.totalorder %s22, 1
      %p66 = por %p64, %p65
      %p68 = scmp.ne.s32.totalorder %s53, %s67
      %p69 = scmp.eq.s32.totalorder %s22, 0
      %p70 = por %p68, %p69
      %s72 = sadd.s32 %s71, 1
      %p75 = scmp.eq.s32.totalorder %s16, 1
      %p76 = scmp.ne.s32.totalorder %s71, %s73
      %p77 = scmp.eq.s32.totalorder %s16, 0
      %p78 = por %p76, %p77
      %p79 = scmp.ne.s32.totalorder %s71, %s73
      %p80 = scmp.eq.s32.totalorder %s21, 1
      %p81 = por %p79, %p80
      %p82 = scmp.ne.s32.totalorder %s73, %s74
      %p83 = scmp.eq.s32.totalorder %s21, 0
      %p84 = por %p82, %p83
      %p85 = scmp.ne.s32.totalorder %s73, %s74
      %p86 = scmp.eq.s32.totalorder %s22, 1
      %p87 = por %p85, %p86
      %p89 = scmp.ne.s32.totalorder %s74, %s88
      %p90 = scmp.eq.s32.totalorder %s22, 0
      %p91 = por %p89, %p90
      %s92 = ssub.s32 %s16, %s23
      %p93 = scmp.eq.s32.totalorder %s92, 0
      %s95 = sadd.s32 %s94, 1
      %s96 = scalar_select %p93, %s94, %s95
      %p99 = pneg %p93
      %p100 = scmp.eq.s32.totalorder %s16, 1
      %p101 = por %p99, %p100
      %p102 = scmp.ne.s32.totalorder %s94, %s97
      %p103 = scmp.eq.s32.totalorder %s16, 0
      %p104 = por %p102, %p103
      %p105 = scmp.ne.s32.totalorder %s94, %s97
      %p106 = scmp.eq.s32.totalorder %s21, 1
      %p107 = por %p105, %p106
      %p108 = scmp.ne.s32.totalorder %s97, %s98
      %p109 = scmp.eq.s32.totalorder %s21, 0
      %p110 = por %p108, %p109
      %p111 = scmp.ne.s32.totalorder %s97, %s98
      %p112 = scmp.eq.s32.totalorder %s22, 1
      %p113 = por %p111, %p112
      %p115 = scmp.ne.s32.totalorder %s98, %s114
      %p116 = scmp.eq.s32.totalorder %s22, 0
      %p117 = por %p115, %p116
      %p118 = scmp.le.s32.totalorder 1, %s16
      %p119 = scmp.lt.s32.totalorder %s16, 3
      %p120 = pnand %p118, %p119
      %p121 = pneg %p120
      // Predicated region
      $region9: #{tpu_custom_call.1} parent=5 // pred_check
        _
      $region10: #{tpu_custom_call.1} parent=5 // pred_check_branch
        %123 = sbr.rel (%p120) target = $region12
      $region11: #{tpu_custom_call.1} parent=5 // pred_region
        %s124 = ssub.s32 %s16, 1
        // Predicated region
        $region13: #{tpu_custom_call.1} parent=11 // pred_check
          %p125 = pneg %p63
        $region14: #{tpu_custom_call.1} parent=11 // pred_check_branch
          %127 = sbr.rel (%p125) target = $region16
        $region15: #{tpu_custom_call.1} parent=11 // pred_region
          %129 = vsyncadd [#allocation6], 0
          %s130 = sshll.u32 %s1, 4
          %s131 = int_to_ptr.hbm [resolvable:$true] %s130
          %s132 = sshll.u32 [#allocation5], 4
          %s133 = int_to_ptr.vmem [resolvable:$true] %s132
          %138 = dma.hbm_to_vmem [thread:$0]  %s131, 256, %s133, [#allocation6], 128, 128, 8
        $region16: #{tpu_custom_call.1} parent=11 // pred_fallthru
          _
        // Predicated region
        $region17: #{tpu_custom_call.1} parent=11 // pred_check
          %p139 = pneg %p84
        $region18: #{tpu_custom_call.1} parent=11 // pred_check_branch
          %141 = sbr.rel (%p139) target = $region20
        $region19: #{tpu_custom_call.1} parent=11 // pred_region
          _
        $region20: #{tpu_custom_call.1} parent=11 // pred_fallthru
          _
      $region12: #{tpu_custom_call.1} parent=5 // pred_fallthru
        _
      %p142 = scmp.lt.s32.totalorder %s16, 2
      // Predicated region
      $region21: #{tpu_custom_call.1} parent=5 // pred_check
        %p143 = pneg %p142
      $region22: #{tpu_custom_call.1} parent=5 // pred_check_branch
        %145 = sbr.rel (%p143) target = $region24
      $region23: #{tpu_custom_call.1} parent=5 // pred_region
        // Predicated region
        $region25: #{tpu_custom_call.1} parent=23 // pred_check
          %p146 = pneg %p36
        $region26: #{tpu_custom_call.1} parent=23 // pred_check_branch
          %148 = sbr.rel (%p146) target = $region28
        $region27: #{tpu_custom_call.1} parent=23 // pred_region
          %s149 = sand.u32 %s26, 1
          %s150 = scalar_lea.sflag [#allocation3], %s149
          %s151 = sand.u32 %s26, 1
          %s152 = smul.addr %s151, 8
          %s153 = scalar_lea.vmem [#allocation2], %s152
          %155 = vsyncadd %s150, 0
          %s156 = smul.addr %s16, 8
          %s157 = scalar_lea.hbm %s0, %s156
          %s159 = sshll.u32 %s157, 4
          %s160 = int_to_ptr.hbm [resolvable:$true] %s159
          %s161 = sshll.u32 %s153, 4
          %s162 = int_to_ptr.vmem [resolvable:$true] %s161
          %164 = dma.hbm_to_vmem [thread:$0]  %s160, 128, %s162, %s150
        $region28: #{tpu_custom_call.1} parent=23 // pred_fallthru
          _
      $region24: #{tpu_custom_call.1} parent=5 // pred_fallthru
        _
      %p165 = scmp.le.s32.totalorder 1, %s16
      %p166 = scmp.lt.s32.totalorder %s16, 3
      %p167 = pnand %p165, %p166
      %p168 = pneg %p167
      // Predicated region
      $region29: #{tpu_custom_call.1} parent=5 // pred_check
        _
      $region30: #{tpu_custom_call.1} parent=5 // pred_check_branch
        %170 = sbr.rel (%p167) target = $region32
      $region31: #{tpu_custom_call.1} parent=5 // pred_region
        %s171 = ssub.s32 %s16, 1
        %s172 = sand.u32 %s29, 1
        %s173 = scalar_lea.sflag [#allocation3], %s172
        %s174 = sand.u32 %s29, 1
        %s175 = smul.addr %s174, 8
        %s176 = scalar_lea.vmem [#allocation2], %s175
        // Predicated region
        $region33: #{tpu_custom_call.1} parent=31 // pred_check
          %p177 = pneg %p42
        $region34: #{tpu_custom_call.1} parent=31 // pred_check_branch
          %179 = sbr.rel (%p177) target = $region36
        $region35: #{tpu_custom_call.1} parent=31 // pred_region
          %181 = dma.done %s173, 128
        $region36: #{tpu_custom_call.1} parent=31 // pred_fallthru
          _
        // Predicated region
        $region37: #{tpu_custom_call.1} parent=31 // pred_check
          %p182 = pneg %p63
        $region38: #{tpu_custom_call.1} parent=31 // pred_check_branch
          %184 = sbr.rel (%p182) target = $region40
        $region39: #{tpu_custom_call.1} parent=31 // pred_region
          %186 = dma.done [#allocation6], 256
        $region40: #{tpu_custom_call.1} parent=31 // pred_fallthru
          _
        %s187 = sand.u32 %s29, 1
        %s188 = scalar_lea.sflag [#allocation3], %s187
        %s189 = sand.u32 %s29, 1
        %s190 = smul.addr %s189, 8
        %s191 = scalar_lea.vmem [#allocation2], %s190
        %p192 = pneg %p42
        %p193 = pneg %p39
        %p194 = pneg %p63
        %p195 = pneg %p60
        %p196 = pneg %p84
        %p197 = pneg %p81
        %p198 = pneg %p110
        %p199 = pneg %p107
        %s200 = sand.u32 %s97, 1
        %s201 = scalar_lea.sflag [#allocation4], %s200
        %s202 = sand.u32 %s97, 1
        %s203 = smul.addr %s202, 8
        %s204 = scalar_lea.vmem [#allocation7], %s203
        %v205 = vld [vmem:[%s176] sm:$0xff]
        %v206 = vld [vmem:[#allocation5] sm:$0xff]
        %v207 = vld [vmem:[#allocation5 + $0x8] sm:$0xff]
        %v208 = vld [vmem:[%s2] sm:$0x1]
        %v210 = vperm.slane %v208, 0
        %vm212 = vcmask 130048
        %v214 = vsel %vm212, %v205, 0
        %216 = vmatpush.msra.mxu0 0.0
        %217 = vmatpush.msra.mxu0 0.0
        %218 = vmatpush.msra.mxu0 0.0
        %219 = vmatpush.msra.mxu0 0.0
        %220 = vmatpush.msra.mxu0 0.0
        %221 = vmatpush.msra.mxu0 0.0
        %222 = vmatpush.msra.mxu0 0.0
        %223 = vmatpush.msra.mxu0 0.0
        %224 = vmatpush.msra.mxu0 0.0
        %225 = vmatpush.msra.mxu0 0.0
        %226 = vmatpush.msra.mxu0 0.0
        %227 = vmatpush.msra.mxu0 0.0
        %228 = vmatpush.msra.mxu0 0.0
        %229 = vmatpush.msra.mxu0 0.0
        %230 = vmatpush.msra.mxu0 %v207
        %231 = vmatpush.msra.mxu0 %v206
        %232 = vmatmul.f32.gmra.mxu0 %v214
        %v233 = vpop.f32.mrf.mxu0
        %v234 = vadd.f32 %v210, %v233
        %235 = vdwg.mxu0
        %v236 = vmax.f32 %v234, 0.0
        %vm237 = vcmask 261120
        %238 = vst.msk [vmem:[%s204] sm:$0xff] %vm237, %v236
        %s239 = sand.u32 %s97, 1
        %s240 = scalar_lea.sflag [#allocation4], %s239
        %s241 = sand.u32 %s97, 1
        %s242 = smul.addr %s241, 8
        %s243 = scalar_lea.vmem [#allocation7], %s242
        // Predicated region
        $region41: #{tpu_custom_call.1} parent=31 // pred_check
          %p244 = pneg %p107
        $region42: #{tpu_custom_call.1} parent=31 // pred_check_branch
          %246 = sbr.rel (%p244) target = $region44
        $region43: #{tpu_custom_call.1} parent=31 // pred_region
          %248 = vsyncadd %s240, 0
          %s249 = smul.addr %s21, 8
          %s250 = scalar_lea.hbm %s3, %s249
          %s252 = sshll.u32 %s243, 4
          %s253 = int_to_ptr.vmem [resolvable:$true] %s252
          %s254 = sshll.u32 %s250, 4
          %s255 = int_to_ptr.hbm [resolvable:$true] %s254
          %257 = dma.vmem_to_hbm [thread:$0]  %s253, 128, %s255, %s240
        $region44: #{tpu_custom_call.1} parent=31 // pred_fallthru
          _
      $region32: #{tpu_custom_call.1} parent=5 // pred_fallthru
        _
      %p258 = scmp.le.s32.totalorder 2, %s16
      // Predicated region
      $region45: #{tpu_custom_call.1} parent=5 // pred_check
        %p259 = pneg %p258
      $region46: #{tpu_custom_call.1} parent=5 // pred_check_branch
        %261 = sbr.rel (%p259) target = $region48
      $region47: #{tpu_custom_call.1} parent=5 // pred_region
        %s262 = ssub.s32 %s16, 2
        // Predicated region
        $region49: #{tpu_custom_call.1} parent=47 // pred_check
          %p263 = pneg %p113
        $region50: #{tpu_custom_call.1} parent=47 // pred_check_branch
          %265 = sbr.rel (%p263) target = $region52
        $region51: #{tpu_custom_call.1} parent=47 // pred_region
          %s266 = sand.u32 %s98, 1
          %s267 = scalar_lea.sflag [#allocation4], %s266
          %s268 = sand.u32 %s98, 1
          %s269 = smul.addr %s268, 8
          %s270 = scalar_lea.vmem [#allocation7], %s269
          %272 = dma.done %s267, 128
        $region52: #{tpu_custom_call.1} parent=47 // pred_fallthru
          _
      $region48: #{tpu_custom_call.1} parent=5 // pred_fallthru
        _
    $region6: #{tpu_custom_call.1} parent=1 // loop_footer
      %s20 = sadd.s32 1, %s16
    $region7: #{tpu_custom_call.1} parent=1 // loop_footer_branch
      %15 = sbr.rel target = $region3
    $region8: #{tpu_custom_call.1} parent=1 // loop_exit
      _
    %273 = vsyncpa [#allocation3], 1
    %s274 = scalar_lea.sflag [#allocation3], 1
    %275 = vsyncpa %s274, 1
    %276 = vsyncpa [#allocation6], 1
    %277 = vsyncpa [#allocation4], 1
    %s278 = scalar_lea.sflag [#allocation4], 1
    %279 = vsyncpa %s278, 1

</llo_original>
